<compile_context>
chip_gen: v6e
topology: v6e:2x2x1
jax: 0.10.0
libtpu: 0.0.40
codegen_flags: <defaults>
</compile_context>

<pallas_src>
import jax
import jax.numpy as jnp
from jax.experimental import pallas as pl
from jax.experimental.pallas import tpu as pltpu

LN_EPS = 1e-5
BN_EPS = 1e-5


def _two_stage_critic_kernel(
    sa_ref, a2_ref,
    wmap_ref, bmap_ref,
    w1sa_ref, w1z_ref, b1_ref,
    w2_ref, b2_ref, w3_ref, b3_ref,
    q_ref,
):
    # --- action2_mapping: Linear(a2_dim -> a1_dim), bf16 MXU / f32 accumulate ---
    z = jnp.dot(a2_ref[...], wmap_ref[...],
                preferred_element_type=jnp.float32) + bmap_ref[...]

    # --- action2_norm: LayerNorm normalization, f32 VPU/EUP math.
    # (The LN affine gamma/beta is folded into w1_z / b1 on the host.)
    mu = jnp.mean(z, axis=-1, keepdims=True)
    var = jnp.mean((z - mu) ** 2, axis=-1, keepdims=True)
    zn = (z - mu) * jax.lax.rsqrt(var + LN_EPS)

    # --- hidden layer 1: two MXU dots (host-packed [state|a1], then zn) ---
    # BN(eval, fresh stats) scale already folded into w1*/b1 on the host.
    h1 = jnp.dot(sa_ref[...], w1sa_ref[...], preferred_element_type=jnp.float32)
    h1 = h1 + jnp.dot(zn.astype(jnp.bfloat16), w1z_ref[...],
                      preferred_element_type=jnp.float32)
    h1 = jnp.maximum(h1 + b1_ref[...], 0.0)

    # --- hidden layer 2: Linear -> BN(folded) -> ReLU ---
    h2 = jnp.dot(h1.astype(jnp.bfloat16), w2_ref[...],
                 preferred_element_type=jnp.float32) + b2_ref[...]
    h2 = jnp.maximum(h2, 0.0)

    # --- output Linear (N=1) as f32 VPU multiply + lane reduction ---
    q = jnp.sum(h2 * w3_ref[...], axis=-1, keepdims=True) + b3_ref[...]
    q_ref[...] = q


def _round_up(x, m):
    return ((x + m - 1) // m) * m


def two_stage_critic_forward(prepared, state_emb, action1_emb, action2_emb,
                             *, max_batch_tile=1024):
    """Returns {'q': (B,), 'reg': 0} exactly like the PyTorch module (eval)."""
    B, S = state_emb.shape
    A1 = action1_emb.shape[1]
    A2 = action2_emb.shape[1]
    SA = S + A1

    # Host-side packing: one lane-contiguous [state | action1] operand (the
    # in-kernel concat / third small-K matmul is gone) and bf16 activations
    # (halves activation DMA bytes; MXU runs bf16 with f32 accumulation).
    sa = jnp.concatenate([state_emb, action1_emb], axis=-1).astype(jnp.bfloat16)
    a2 = action2_emb.astype(jnp.bfloat16)

    # Batch-tile selection.
    max_batch_tile = max(8, (max_batch_tile // 8) * 8)
    if B > max_batch_tile:
        TB = max_batch_tile
    elif B > 8:
        # Split into >= 2 grid steps so the "parallel" batch axis can shard
        # across the two v7x TensorCores (no-op on single-TC v5e/v6e).
        TB = _round_up(pl.cdiv(B, 2), 8)
    else:
        TB = B
    grid = (pl.cdiv(B, TB),)

    def act_spec(dim):
        return pl.BlockSpec((TB, dim), lambda i: (i, 0))

    def resident_spec(shape):
        # Weights / biases stay VMEM-resident across all batch tiles.
        return pl.BlockSpec(shape, lambda i: (0,) * len(shape))

    in_specs = [
        act_spec(SA), act_spec(A2),
        resident_spec(prepared["w_map"].shape),
        resident_spec(prepared["b_map"].shape),
        resident_spec(prepared["w1_sa"].shape),
        resident_spec(prepared["w1_z"].shape),
        resident_spec(prepared["b1"].shape),
        resident_spec(prepared["w2"].shape),
        resident_spec(prepared["b2"].shape),
        resident_spec(prepared["w3"].shape),
        resident_spec(prepared["b3"].shape),
    ]
    out_spec = pl.BlockSpec((TB, 1), lambda i: (i, 0))

    q = pl.pallas_call(
        _two_stage_critic_kernel,
        out_shape=jax.ShapeDtypeStruct((B, 1), jnp.float32),
        grid=grid,
        in_specs=in_specs,
        out_specs=out_spec,
        compiler_params=pltpu.CompilerParams(
            dimension_semantics=("parallel",),
            vmem_limit_bytes=32 * 1024 * 1024,  # safe on v5e/v6e/v7x
        ),
    )(
        sa, a2,
        prepared["w_map"], prepared["b_map"],
        prepared["w1_sa"], prepared["w1_z"], prepared["b1"],
        prepared["w2"], prepared["b2"], prepared["w3"], prepared["b3"],
    )
    return {"q": q.reshape(-1), "reg": 0}


def init_params(key, state_dim, a1_dim, a2_dim, hidden_dims):
    """Deterministic synthetic parameters (shapes follow the module __init__)."""
    ks = jax.random.split(key, 8)
    in_dim = state_dim + 2 * a1_dim  # separate_action_dims becomes [a1, a1]
    h1, h2 = hidden_dims

    def lin(k, fan_in, fan_out):
        # weights stored already transposed: (in, out) so the kernel does x @ W
        return 0.1 * jax.random.normal(k, (fan_in, fan_out), jnp.float32)

    return {
        # action2_mapping: Linear(a2_dim, a1_dim)
        "w_map": lin(ks[0], a2_dim, a1_dim),
        "b_map": 0.01 * jax.random.normal(ks[1], (1, a1_dim), jnp.float32),
        # action2_norm: LayerNorm(a1_dim) (default affine init)
        "ln_g": jnp.ones((1, a1_dim), jnp.float32),
        "ln_b": jnp.zeros((1, a1_dim), jnp.float32),
        # DNN: Linear(in_dim, h1) -> Linear(h1, h2) -> Linear(h2, 1)
        "w1": lin(ks[2], in_dim, h1),
        "b1": 0.01 * jax.random.normal(ks[3], (1, h1), jnp.float32),
        "w2": lin(ks[4], h1, h2),
        "b2": 0.01 * jax.random.normal(ks[5], (1, h2), jnp.float32),
        "w3": lin(ks[6], h2, 1),
        "b3": 0.01 * jax.random.normal(ks[7], (1, 1), jnp.float32),
    }


def prepare_params(params, state_dim, a1_dim):
    """Host-side, one-time transforms:
    - split W1 along its input axis into [state|action1] and z blocks
    - fold BatchNorm eval scale rsqrt(1 + eps) into W1/b1 and W2/b2
    - fold LayerNorm affine (gamma into w1_z rows, beta@w1_z into b1)
    - cast MXU weights to bf16; reshape W3 to a (1, H2) row (VPU output layer)
    """
    bn_scale = 1.0 / jnp.sqrt(jnp.float32(1.0 + BN_EPS))
    w1 = params["w1"] * bn_scale                       # BN fold
    w1_sa = w1[: state_dim + a1_dim, :]
    w1_z_bn = w1[state_dim + a1_dim:, :]               # BN-scaled only
    w1_z = w1_z_bn * params["ln_g"].reshape(-1, 1)     # LN gamma fold
    b1 = params["b1"] * bn_scale + params["ln_b"] @ w1_z_bn  # LN beta fold
    return {
        "w_map": params["w_map"].astype(jnp.bfloat16),
        "b_map": params["b_map"],
        "w1_sa": w1_sa.astype(jnp.bfloat16),
        "w1_z": w1_z.astype(jnp.bfloat16),
        "b1": b1,
        "w2": (params["w2"] * bn_scale).astype(jnp.bfloat16),
        "b2": params["b2"] * bn_scale,
        "w3": params["w3"].reshape(1, -1),             # f32, used on the VPU
        "b3": params["b3"],
    }


def reference_forward(params, state_emb, action1_emb, action2_emb):
    """Pure-JAX f32 reference (un-folded) for correctness check."""
    z = action2_emb @ params["w_map"] + params["b_map"]
    mu = jnp.mean(z, axis=-1, keepdims=True)
    var = jnp.mean((z - mu) ** 2, axis=-1, keepdims=True)
    zn = (z - mu) / jnp.sqrt(var + LN_EPS) * params["ln_g"] + params["ln_b"]
    x = jnp.concatenate([state_emb, action1_emb, zn], axis=-1)
    bn_scale = 1.0 / jnp.sqrt(1.0 + BN_EPS)
    h1 = jnp.maximum((x @ params["w1"] + params["b1"]) * bn_scale, 0.0)
    h2 = jnp.maximum((h1 @ params["w2"] + params["b2"]) * bn_scale, 0.0)
    return (h2 @ params["w3"] + params["b3"]).reshape(-1)


if __name__ == "__main__":
    # Small shapes implied by the forward: (B, state_dim), (B, a1_dim), (B, a2_dim)
    B, STATE_DIM, A1_DIM, A2_DIM = 8, 32, 16, 24
    HIDDEN_DIMS = [256, 64]  # default --critic_hidden_dims

    key = jax.random.PRNGKey(0)
    k_p, k_s, k_a1, k_a2 = jax.random.split(key, 4)

    params = init_params(k_p, STATE_DIM, A1_DIM, A2_DIM, HIDDEN_DIMS)
    prepared = prepare_params(params, STATE_DIM, A1_DIM)

    state_emb = jax.random.normal(k_s, (B, STATE_DIM), jnp.float32)
    action1_emb = jax.random.normal(k_a1, (B, A1_DIM), jnp.float32)
    action2_emb = jax.random.normal(k_a2, (B, A2_DIM), jnp.float32)

    out = two_stage_critic_forward(prepared, state_emb, action1_emb, action2_emb)
    q = jax.block_until_ready(out["q"])

    q_ref = reference_forward(params, state_emb, action1_emb, action2_emb)
    assert q.shape == (B,)
    assert out["reg"] == 0
    # bf16 MXU operands -> looser tolerance than the pure-f32 check.
    assert jnp.allclose(q, q_ref, atol=3e-2, rtol=3e-2), (q, q_ref)

    # Secondary check: multi-tile grid path (B > 8 -> >= 2 grid steps,
    # including a partial last tile).
    B2 = 24
    k_s2, k_a12, k_a22 = jax.random.split(jax.random.PRNGKey(1), 3)
    s2 = jax.random.normal(k_s2, (B2, STATE_DIM), jnp.float32)
    a12 = jax.random.normal(k_a12, (B2, A1_DIM), jnp.float32)
    a22 = jax.random.normal(k_a22, (B2, A2_DIM), jnp.float32)
    out2 = two_stage_critic_forward(prepared, s2, a12, a22)
    q2 = jax.block_until_ready(out2["q"])
    q2_ref = reference_forward(params, s2, a12, a22)
    assert q2.shape == (B2,)
    assert jnp.allclose(q2, q2_ref, atol=3e-2, rtol=3e-2), (q2, q2_ref)

    print("KERNEL_OK")
</pallas_src>

<mosaic_0001>
module attributes {stable_mosaic.version = 11 : i64} {
  func.func @_two_stage_critic_kernel(%arg0: i32, %arg1: memref<8x48xbf16, #tpu.memory_space<vmem>>, %arg2: memref<8x24xbf16, #tpu.memory_space<vmem>>, %arg3: memref<24x16xbf16, #tpu.memory_space<vmem>>, %arg4: memref<1x16xf32, #tpu.memory_space<vmem>>, %arg5: memref<48x256xbf16, #tpu.memory_space<vmem>>, %arg6: memref<16x256xbf16, #tpu.memory_space<vmem>>, %arg7: memref<1x256xf32, #tpu.memory_space<vmem>>, %arg8: memref<256x64xbf16, #tpu.memory_space<vmem>>, %arg9: memref<1x64xf32, #tpu.memory_space<vmem>>, %arg10: memref<1x64xf32, #tpu.memory_space<vmem>>, %arg11: memref<1x1xf32, #tpu.memory_space<vmem>>, %arg12: memref<8x1xf32, #tpu.memory_space<vmem>>) attributes {dimension_semantics = [#tpu.dimension_semantics<parallel>], iteration_bounds = array<i64: 1>, scalar_prefetch = 0 : i64, scratch_operands = 0 : i64, tpu.core_type = #tpu.core_type<tc>, window_params = [{transform_indices = @transform_0, window_bounds = array<i64: 8, 48>}, {transform_indices = @transform_1, window_bounds = array<i64: 8, 24>}, {pipeline_mode = #tpu.pipeline_mode<synchronous>, transform_indices = @transform_2, window_bounds = array<i64: 24, 16>}, {pipeline_mode = #tpu.pipeline_mode<synchronous>, transform_indices = @transform_3, window_bounds = array<i64: 1, 16>}, {pipeline_mode = #tpu.pipeline_mode<synchronous>, transform_indices = @transform_4, window_bounds = array<i64: 48, 256>}, {pipeline_mode = #tpu.pipeline_mode<synchronous>, transform_indices = @transform_5, window_bounds = array<i64: 16, 256>}, {pipeline_mode = #tpu.pipeline_mode<synchronous>, transform_indices = @transform_6, window_bounds = array<i64: 1, 256>}, {pipeline_mode = #tpu.pipeline_mode<synchronous>, transform_indices = @transform_7, window_bounds = array<i64: 256, 64>}, {pipeline_mode = #tpu.pipeline_mode<synchronous>, transform_indices = @transform_8, window_bounds = array<i64: 1, 64>}, {pipeline_mode = #tpu.pipeline_mode<synchronous>, transform_indices = @transform_9, window_bounds = array<i64: 1, 64>}, {pipeline_mode = #tpu.pipeline_mode<synchronous>, transform_indices = @transform_10, window_bounds = array<i64: 1, 1>}, {transform_indices = @transform_11, window_bounds = array<i64: 8, 1>}]} {
    %c0 = arith.constant 0 : index
    %c0_0 = arith.constant 0 : index
    %0 = vector.load %arg2[%c0, %c0_0] : memref<8x24xbf16, #tpu.memory_space<vmem>>, vector<8x24xbf16>
    %c0_1 = arith.constant 0 : index
    %c0_2 = arith.constant 0 : index
    %1 = vector.load %arg3[%c0_1, %c0_2] : memref<24x16xbf16, #tpu.memory_space<vmem>>, vector<24x16xbf16>
    %cst = arith.constant dense<0.000000e+00> : vector<8x16xf32>
    %2 = tpu.matmul %0, %1, %cst {dimension_numbers = #tpu.dot_dimension_numbers<[1], [0], [0], [1], [0, 0, 1, 1], [], []>} : vector<8x24xbf16>, vector<24x16xbf16>, vector<8x16xf32> -> vector<8x16xf32>
    %c0_3 = arith.constant 0 : index
    %c0_4 = arith.constant 0 : index
    %3 = vector.load %arg4[%c0_3, %c0_4] : memref<1x16xf32, #tpu.memory_space<vmem>>, vector<1x16xf32>
    %4 = vector.broadcast %3 : vector<1x16xf32> to vector<8x16xf32>
    %5 = arith.addf %2, %4 : vector<8x16xf32>
    %cst_5 = arith.constant dense<0.000000e+00> : vector<8xf32>
    %6 = vector.multi_reduction <add>, %5, %cst_5 [1] : vector<8x16xf32> to vector<8xf32>
    %7 = vector.shape_cast %6 : vector<8xf32> to vector<8x1xf32>
    %cst_6 = arith.constant 1.600000e+01 : f32
    %8 = vector.broadcast %cst_6 : f32 to vector<8x1xf32>
    %9 = arith.divf %7, %8 : vector<8x1xf32>
    %10 = vector.broadcast %9 : vector<8x1xf32> to vector<8x16xf32>
    %11 = arith.subf %5, %10 : vector<8x16xf32>
    %12 = arith.mulf %11, %11 : vector<8x16xf32>
    %cst_7 = arith.constant dense<0.000000e+00> : vector<8xf32>
    %13 = vector.multi_reduction <add>, %12, %cst_7 [1] : vector<8x16xf32> to vector<8xf32>
    %14 = vector.shape_cast %13 : vector<8xf32> to vector<8x1xf32>
    %cst_8 = arith.constant 1.600000e+01 : f32
    %15 = vector.broadcast %cst_8 : f32 to vector<8x1xf32>
    %16 = arith.divf %14, %15 : vector<8x1xf32>
    %17 = vector.broadcast %9 : vector<8x1xf32> to vector<8x16xf32>
    %18 = arith.subf %5, %17 : vector<8x16xf32>
    %cst_9 = arith.constant 9.99999974E-6 : f32
    %19 = vector.broadcast %cst_9 : f32 to vector<8x1xf32>
    %20 = arith.addf %16, %19 : vector<8x1xf32>
    %21 = math.rsqrt %20 : vector<8x1xf32>
    %22 = vector.broadcast %21 : vector<8x1xf32> to vector<8x16xf32>
    %23 = arith.mulf %18, %22 : vector<8x16xf32>
    %c0_10 = arith.constant 0 : index
    %c0_11 = arith.constant 0 : index
    %24 = vector.load %arg1[%c0_10, %c0_11] : memref<8x48xbf16, #tpu.memory_space<vmem>>, vector<8x48xbf16>
    %c0_12 = arith.constant 0 : index
    %c0_13 = arith.constant 0 : index
    %25 = vector.load %arg5[%c0_12, %c0_13] : memref<48x256xbf16, #tpu.memory_space<vmem>>, vector<48x256xbf16>
    %cst_14 = arith.constant dense<0.000000e+00> : vector<8x256xf32>
    %26 = tpu.matmul %24, %25, %cst_14 {dimension_numbers = #tpu.dot_dimension_numbers<[1], [0], [0], [1], [0, 0, 1, 1], [], []>} : vector<8x48xbf16>, vector<48x256xbf16>, vector<8x256xf32> -> vector<8x256xf32>
    %27 = arith.truncf %23 : vector<8x16xf32> to vector<8x16xbf16>
    %c0_15 = arith.constant 0 : index
    %c0_16 = arith.constant 0 : index
    %28 = vector.load %arg6[%c0_15, %c0_16] : memref<16x256xbf16, #tpu.memory_space<vmem>>, vector<16x256xbf16>
    %cst_17 = arith.constant dense<0.000000e+00> : vector<8x256xf32>
    %29 = tpu.matmul %27, %28, %cst_17 {dimension_numbers = #tpu.dot_dimension_numbers<[1], [0], [0], [1], [0, 0, 1, 1], [], []>} : vector<8x16xbf16>, vector<16x256xbf16>, vector<8x256xf32> -> vector<8x256xf32>
    %30 = arith.addf %26, %29 : vector<8x256xf32>
    %c0_18 = arith.constant 0 : index
    %c0_19 = arith.constant 0 : index
    %31 = vector.load %arg7[%c0_18, %c0_19] : memref<1x256xf32, #tpu.memory_space<vmem>>, vector<1x256xf32>
    %32 = vector.broadcast %31 : vector<1x256xf32> to vector<8x256xf32>
    %33 = arith.addf %30, %32 : vector<8x256xf32>
    %cst_20 = arith.constant 0.000000e+00 : f32
    %34 = vector.broadcast %cst_20 : f32 to vector<8x256xf32>
    %35 = arith.maximumf %33, %34 : vector<8x256xf32>
    %36 = arith.truncf %35 : vector<8x256xf32> to vector<8x256xbf16>
    %c0_21 = arith.constant 0 : index
    %c0_22 = arith.constant 0 : index
    %37 = vector.load %arg8[%c0_21, %c0_22] : memref<256x64xbf16, #tpu.memory_space<vmem>>, vector<256x64xbf16>
    %cst_23 = arith.constant dense<0.000000e+00> : vector<8x64xf32>
    %38 = tpu.matmul %36, %37, %cst_23 {dimension_numbers = #tpu.dot_dimension_numbers<[1], [0], [0], [1], [0, 0, 1, 1], [], []>} : vector<8x256xbf16>, vector<256x64xbf16>, vector<8x64xf32> -> vector<8x64xf32>
    %c0_24 = arith.constant 0 : index
    %c0_25 = arith.constant 0 : index
    %39 = vector.load %arg9[%c0_24, %c0_25] : memref<1x64xf32, #tpu.memory_space<vmem>>, vector<1x64xf32>
    %40 = vector.broadcast %39 : vector<1x64xf32> to vector<8x64xf32>
    %41 = arith.addf %38, %40 : vector<8x64xf32>
    %cst_26 = arith.constant 0.000000e+00 : f32
    %42 = vector.broadcast %cst_26 : f32 to vector<8x64xf32>
    %43 = arith.maximumf %41, %42 : vector<8x64xf32>
    %c0_27 = arith.constant 0 : index
    %c0_28 = arith.constant 0 : index
    %44 = vector.load %arg10[%c0_27, %c0_28] : memref<1x64xf32, #tpu.memory_space<vmem>>, vector<1x64xf32>
    %45 = vector.broadcast %44 : vector<1x64xf32> to vector<8x64xf32>
    %46 = arith.mulf %43, %45 : vector<8x64xf32>
    %cst_29 = arith.constant dense<0.000000e+00> : vector<8xf32>
    %47 = vector.multi_reduction <add>, %46, %cst_29 [1] : vector<8x64xf32> to vector<8xf32>
    %48 = vector.shape_cast %47 : vector<8xf32> to vector<8x1xf32>
    %c0_30 = arith.constant 0 : index
    %c0_31 = arith.constant 0 : index
    %49 = vector.load %arg11[%c0_30, %c0_31] : memref<1x1xf32, #tpu.memory_space<vmem>>, vector<1x1xf32>
    %50 = vector.broadcast %49 : vector<1x1xf32> to vector<8x1xf32>
    %51 = arith.addf %48, %50 : vector<8x1xf32>
    %c0_32 = arith.constant 0 : index
    %c0_33 = arith.constant 0 : index
    %52 = vector.load %arg12[%c0_32, %c0_33] : memref<8x1xf32, #tpu.memory_space<vmem>>, vector<8x1xf32>
    tpu.vector_store %arg12[%c0_32, %c0_33], %51 {strides = array<i32>} : memref<8x1xf32, #tpu.memory_space<vmem>>, vector<8x1xf32>,
    return
  }
  func.func @transform_0(%arg0: i32) -> (i32, i32) {
    %c0_i32 = arith.constant 0 : i32
    %c0_i32_0 = arith.constant 0 : i32
    return %arg0, %c0_i32 : i32, i32
  }
  func.func @transform_1(%arg0: i32) -> (i32, i32) {
    %c0_i32 = arith.constant 0 : i32
    %c0_i32_0 = arith.constant 0 : i32
    return %arg0, %c0_i32 : i32, i32
  }
  func.func @transform_2(%arg0: i32) -> (i32, i32) {
    %c0_i32 = arith.constant 0 : i32
    %c0_i32_0 = arith.constant 0 : i32
    %c0_i32_1 = arith.constant 0 : i32
    return %c0_i32, %c0_i32_0 : i32, i32
  }
  func.func @transform_3(%arg0: i32) -> (i32, i32) {
    %c0_i32 = arith.constant 0 : i32
    %c0_i32_0 = arith.constant 0 : i32
    %c0_i32_1 = arith.constant 0 : i32
    return %c0_i32, %c0_i32_0 : i32, i32
  }
  func.func @transform_4(%arg0: i32) -> (i32, i32) {
    %c0_i32 = arith.constant 0 : i32
    %c0_i32_0 = arith.constant 0 : i32
    %c0_i32_1 = arith.constant 0 : i32
    return %c0_i32, %c0_i32_0 : i32, i32
  }
  func.func @transform_5(%arg0: i32) -> (i32, i32) {
    %c0_i32 = arith.constant 0 : i32
    %c0_i32_0 = arith.constant 0 : i32
    %c0_i32_1 = arith.constant 0 : i32
    return %c0_i32, %c0_i32_0 : i32, i32
  }
  func.func @transform_6(%arg0: i32) -> (i32, i32) {
    %c0_i32 = arith.constant 0 : i32
    %c0_i32_0 = arith.constant 0 : i32
    %c0_i32_1 = arith.constant 0 : i32
    return %c0_i32, %c0_i32_0 : i32, i32
  }
  func.func @transform_7(%arg0: i32) -> (i32, i32) {
    %c0_i32 = arith.constant 0 : i32
    %c0_i32_0 = arith.constant 0 : i32
    %c0_i32_1 = arith.constant 0 : i32
    return %c0_i32, %c0_i32_0 : i32, i32
  }
  func.func @transform_8(%arg0: i32) -> (i32, i32) {
    %c0_i32 = arith.constant 0 : i32
    %c0_i32_0 = arith.constant 0 : i32
    %c0_i32_1 = arith.constant 0 : i32
    return %c0_i32, %c0_i32_0 : i32, i32
  }
  func.func @transform_9(%arg0: i32) -> (i32, i32) {
    %c0_i32 = arith.constant 0 : i32
    %c0_i32_0 = arith.constant 0 : i32
    %c0_i32_1 = arith.constant 0 : i32
    return %c0_i32, %c0_i32_0 : i32, i32
  }
  func.func @transform_10(%arg0: i32) -> (i32, i32) {
    %c0_i32 = arith.constant 0 : i32
    %c0_i32_0 = arith.constant 0 : i32
    %c0_i32_1 = arith.constant 0 : i32
    return %c0_i32, %c0_i32_0 : i32, i32
  }
  func.func @transform_11(%arg0: i32) -> (i32, i32) {
    %c0_i32 = arith.constant 0 : i32
    %c0_i32_0 = arith.constant 0 : i32
    return %arg0, %c0_i32 : i32, i32
  }
}

</mosaic_0001>

<llo_original>
// kernel: tpu_custom_call.1
$region0: #{tpu_custom_call.1}
  #allocation0 [shape = 'u32[]', space=smem, size = 0x4, offset = 0x4, fixed_abs, tag = 'smem constant byte address 0x4 - core index']
  #allocation1 [shape = 'u32[144,128]{1,0:T(1,128)}', space=vmem, size = 0x12000, scoped, tag = 'internal scratch']
  #allocation2 [shape = 'f32[1,1]{1,0:T(1,128)S(1)}', space=vmem, size = 0x200, scoped, tag = 'scoped memory for tpu_custom_call.1']
  %s0 = inlined_call_operand.vmem [shape: bf16[8,48], index: 0, kind: input, shape index: {}]
  %s1 = inlined_call_operand.vmem [shape: bf16[8,24], index: 1, kind: input, shape index: {}]
  %s2 = inlined_call_operand.vmem [shape: bf16[24,16], index: 2, kind: input, shape index: {}]
  %s3 = inlined_call_operand.vmem [shape: f32[1,16], index: 3, kind: input, shape index: {}]
  %s4 = inlined_call_operand.vmem [shape: bf16[48,256], index: 4, kind: input, shape index: {}]
  %s5 = inlined_call_operand.vmem [shape: bf16[16,256], index: 5, kind: input, shape index: {}]
  %s6 = inlined_call_operand.vmem [shape: f32[1,256], index: 6, kind: input, shape index: {}]
  %s7 = inlined_call_operand.vmem [shape: bf16[256,64], index: 7, kind: input, shape index: {}]
  %s8 = inlined_call_operand.vmem [shape: f32[1,64], index: 8, kind: input, shape index: {}]
  %s9 = inlined_call_operand.vmem [shape: f32[1,64], index: 9, kind: input, shape index: {}]
  %s10 = inlined_call_operand.<no memory space> [shape: f32[1,1], index: 10, kind: input, shape index: {}]
  %s11 = inlined_call_operand.vmem [shape: f32[8,1], index: 11, kind: output, shape index: {}]
  %s12 = sld [smem:[#allocation0]]
  $region54: #{tpu_custom_call.1} parent=0
    _
  %s14 = ssub.s32 1, %s12
  %s15 = scalar_select 0, %s14, %s12
  %v16 = vstv %s10
  %17 = vst [vmem:[#allocation2] sm:$0x1] %v16
  // Predicated region
  $region2: #{tpu_custom_call.1} parent=0 // pred_check
    _
  $region3: #{tpu_custom_call.1} parent=0 // pred_check_branch
    %19 = sbr.rel (0) target = $region5
  $region4: #{tpu_custom_call.1} parent=0 // pred_region
    _
  $region5: #{tpu_custom_call.1} parent=0 // pred_fallthru
    _
  // Predicated region
  $region6: #{tpu_custom_call.1} parent=0 // pred_check
    _
  $region7: #{tpu_custom_call.1} parent=0 // pred_check_branch
    %21 = sbr.rel (0) target = $region9
  $region8: #{tpu_custom_call.1} parent=0 // pred_region
    _
  $region9: #{tpu_custom_call.1} parent=0 // pred_fallthru
    _
  // Predicated region
  $region10: #{tpu_custom_call.1} parent=0 // pred_check
    _
  $region11: #{tpu_custom_call.1} parent=0 // pred_check_branch
    %23 = sbr.rel (0) target = $region13
  $region12: #{tpu_custom_call.1} parent=0 // pred_region
    _
  $region13: #{tpu_custom_call.1} parent=0 // pred_fallthru
    _
  // Predicated region
  $region14: #{tpu_custom_call.1} parent=0 // pred_check
    _
  $region15: #{tpu_custom_call.1} parent=0 // pred_check_branch
    %25 = sbr.rel (0) target = $region17
  $region16: #{tpu_custom_call.1} parent=0 // pred_region
    _
  $region17: #{tpu_custom_call.1} parent=0 // pred_fallthru
    _
  // Predicated region
  $region18: #{tpu_custom_call.1} parent=0 // pred_check
    _
  $region19: #{tpu_custom_call.1} parent=0 // pred_check_branch
    %27 = sbr.rel (0) target = $region21
  $region20: #{tpu_custom_call.1} parent=0 // pred_region
    _
  $region21: #{tpu_custom_call.1} parent=0 // pred_fallthru
    _
  // Predicated region
  $region22: #{tpu_custom_call.1} parent=0 // pred_check
    _
  $region23: #{tpu_custom_call.1} parent=0 // pred_check_branch
    %29 = sbr.rel (0) target = $region25
  $region24: #{tpu_custom_call.1} parent=0 // pred_region
    _
  $region25: #{tpu_custom_call.1} parent=0 // pred_fallthru
    _
  // Predicated region
  $region26: #{tpu_custom_call.1} parent=0 // pred_check
    _
  $region27: #{tpu_custom_call.1} parent=0 // pred_check_branch
    %31 = sbr.rel (0) target = $region29
  $region28: #{tpu_custom_call.1} parent=0 // pred_region
    _
  $region29: #{tpu_custom_call.1} parent=0 // pred_fallthru
    _
  // Predicated region
  $region30: #{tpu_custom_call.1} parent=0 // pred_check
    _
  $region31: #{tpu_custom_call.1} parent=0 // pred_check_branch
    %33 = sbr.rel (0) target = $region33
  $region32: #{tpu_custom_call.1} parent=0 // pred_region
    _
  $region33: #{tpu_custom_call.1} parent=0 // pred_fallthru
    _
  // Predicated region
  $region34: #{tpu_custom_call.1} parent=0 // pred_check
    _
  $region35: #{tpu_custom_call.1} parent=0 // pred_check_branch
    %35 = sbr.rel (0) target = $region37
  $region36: #{tpu_custom_call.1} parent=0 // pred_region
    _
  $region37: #{tpu_custom_call.1} parent=0 // pred_fallthru
    _
  // Predicated region
  $region38: #{tpu_custom_call.1} parent=0 // pred_check
    _
  $region39: #{tpu_custom_call.1} parent=0 // pred_check_branch
    %37 = sbr.rel (0) target = $region41
  $region40: #{tpu_custom_call.1} parent=0 // pred_region
    _
  $region41: #{tpu_custom_call.1} parent=0 // pred_fallthru
    _
  // Predicated region
  $region42: #{tpu_custom_call.1} parent=0 // pred_check
    _
  $region43: #{tpu_custom_call.1} parent=0 // pred_check_branch
    %39 = sbr.rel (0) target = $region45
  $region44: #{tpu_custom_call.1} parent=0 // pred_region
    _
  $region45: #{tpu_custom_call.1} parent=0 // pred_fallthru
    _
  %v41 = vld [vmem:[%s1] sm:$0xf]
  %v42 = vld [vmem:[%s2] sm:$0xf]
  %v43 = vld [vmem:[%s2 + $0x4] sm:$0xf]
  %v44 = vld [vmem:[%s2 + $0x8] sm:$0xf]
  %v45 = vld [vmem:[%s3] sm:$0x1]
  %v47 = vlaneseq
  %v48 = vshrl.u32 %v47, 7
  %v49 = vsub.s32 0, %v48
  %v50 = vrot.slane %v45, %v49
  %v55 = vunpack.c.l.b16 %v42
  %v56 = vunpack.c.l.b16 %v43
  %v57 = vunpack.c.l.b16 %v44
  %v58 = vpack.c.b16 %v56, %v55
  %v59 = vpack.c.b16 %v57, %v57
  %vm61 = vcmask 195584
  %v63 = vsel %vm61, %v41, 0
  %vm65 = vcmask 1043456
  %v67 = vsel %vm65, %v59, 0
  %69 = vmatprep.subr.bf16.mxu0 0
  %70 = vmatpush1.bf16.msra.mxu0 0
  %71 = vmatprep.subr.bf16.mxu0 0
  %72 = vmatpush1.bf16.msra.mxu0 0
  %73 = vmatprep.subr.bf16.mxu0 0
  %74 = vmatpush1.bf16.msra.mxu0 0
  %75 = vmatprep.subr.bf16.mxu0 0
  %76 = vmatpush1.bf16.msra.mxu0 0
  %77 = vmatprep.subr.bf16.mxu0 0
  %78 = vmatpush1.bf16.msra.mxu0 0
  %79 = vmatprep.subr.bf16.mxu0 0
  %80 = vmatpush1.bf16.msra.mxu0 0
  %81 = vmatprep.subr.bf16.mxu0 0
  %82 = vmatpush1.bf16.msra.mxu0 %v67
  %83 = vmatprep.subr.bf16.mxu0 0
  %84 = vmatpush1.bf16.msra.mxu0 %v58
  %85 = vmatprep.subr.bf16.mxu0 0
  %86 = vmatpush2.bf16.msra.mxu0 0
  %87 = vmatprep.subr.bf16.mxu0 0
  %88 = vmatpush2.bf16.msra.mxu0 0
  %89 = vmatprep.subr.bf16.mxu0 0
  %90 = vmatpush2.bf16.msra.mxu0 0
  %91 = vmatprep.subr.bf16.mxu0 0
  %92 = vmatpush2.bf16.msra.mxu0 0
  %93 = vmatprep.subr.bf16.mxu0 0
  %94 = vmatpush2.bf16.msra.mxu0 0
  %95 = vmatprep.subr.bf16.mxu0 0
  %96 = vmatpush2.bf16.msra.mxu0 0
  %97 = vmatprep.subr.bf16.mxu0 0
  %98 = vmatpush2.bf16.msra.mxu0 0
  %99 = vmatprep.subr.bf16.mxu0 0
  %100 = vmatpush2.bf16.msra.mxu0 0
  %101 = vmatprep.mubr.bf16.mxu0 0
  %102 = vmatmul.mubr.bf16.gmra.mxu0 %v63
  %v103 = vpop.f32.mrf.mxu0
  %v104 = vadd.f32 %v50, %v103
  %v105 = vpop.f32.mrf.mxu0
  %v106 = vpop.f32.mrf.mxu0
  %v107 = vpop.f32.mrf.mxu0
  %108 = vdwg.mxu0
  %vm109 = vcmask 130048
  %v110 = vsel %vm109, %v104, 0.0
  %111 = vadd.xlane.f32.xlu0 %v110
  %v112 = vpop.xlane.xlu0 %111
  %v113 = vrcp.pop 16.0
  %v114 = vmul.f32 %v112, %v113
  %v115 = vsub.f32 %v104, %v114
  %v116 = vmul.f32 %v115, %v115
  %v117 = vsel %vm109, %v116, 0.0
  %118 = vadd.xlane.f32.xlu0 %v117
  %v119 = vpop.xlane.xlu0 %118
  %v120 = vmul.f32 %v119, %v113
  %v121 = vadd.f32 %v120, 1e-05
  %v122 = vrsqrt.pop %v121
  %v123 = vmul.f32 %v115, %v122
  %v124 = vld [vmem:[%s0] sm:$0xf]
  %v125 = vld [vmem:[%s4] sm:$0xff]
  %v126 = vld [vmem:[%s4 + $0x8] sm:$0xff]
  %v127 = vld [vmem:[%s4 + $0x10] sm:$0xff]
  %v128 = vld [vmem:[%s4 + $0x18] sm:$0xff]
  %v129 = vld [vmem:[%s4 + $0x20] sm:$0xff]
  %v130 = vld [vmem:[%s4 + $0x28] sm:$0xff]
  %v131 = vpack.c.bf16 %v123, %v123
  %v132 = vld [vmem:[%s5] sm:$0xff]
  %v133 = vld [vmem:[%s5 + $0x8] sm:$0xff]
  %v136 = vunpack.c.l.b16 %v132
  %v137 = vunpack.c.h.b16 %v132
  %v138 = vunpack.c.l.b16 %v133
  %v139 = vunpack.c.h.b16 %v133
  %v140 = vpack.c.b16 %v138, %v136
  %v141 = vpack.c.b16 %v139, %v137
  %v145 = vsel %vm109, %v131, 0
  %147 = vmatprep.subr.bf16.mxu0 0
  %148 = vmatpush1.bf16.msra.mxu0 0
  %149 = vmatprep.subr.bf16.mxu0 0
  %150 = vmatpush1.bf16.msra.mxu0 0
  %151 = vmatprep.subr.bf16.mxu0 0
  %152 = vmatpush1.bf16.msra.mxu0 0
  %153 = vmatprep.subr.bf16.mxu0 0
  %154 = vmatpush1.bf16.msra.mxu0 0
  %155 = vmatprep.subr.bf16.mxu0 0
  %156 = vmatpush1.bf16.msra.mxu0 0
  %157 = vmatprep.subr.bf16.mxu0 0
  %158 = vmatpush1.bf16.msra.mxu0 0
  %159 = vmatprep.subr.bf16.mxu0 0
  %160 = vmatpush1.bf16.msra.mxu0 0
  %161 = vmatprep.subr.bf16.mxu0 %v141
  %162 = vmatpush1.bf16.msra.mxu0 %v140
  %163 = vmatprep.subr.bf16.mxu0 0
  %164 = vmatpush2.bf16.msra.mxu0 0
  %165 = vmatprep.subr.bf16.mxu0 0
  %166 = vmatpush2.bf16.msra.mxu0 0
  %167 = vmatprep.subr.bf16.mxu0 0
  %168 = vmatpush2.bf16.msra.mxu0 0
  %169 = vmatprep.subr.bf16.mxu0 0
  %170 = vmatpush2.bf16.msra.mxu0 0
  %171 = vmatprep.subr.bf16.mxu0 0
  %172 = vmatpush2.bf16.msra.mxu0 0
  %173 = vmatprep.subr.bf16.mxu0 0
  %174 = vmatpush2.bf16.msra.mxu0 0
  %175 = vmatprep.subr.bf16.mxu0 0
  %176 = vmatpush2.bf16.msra.mxu0 0
  %177 = vmatprep.subr.bf16.mxu0 0
  %178 = vmatpush2.bf16.msra.mxu0 0
  %179 = vmatprep.mubr.bf16.mxu0 0
  %180 = vmatmul.mubr.bf16.gmra.mxu0 %v145
  %v181 = vpop.f32.mrf.mxu0
  %v182 = vadd.f32 0.0, %v181
  %v183 = vpop.f32.mrf.mxu0
  %v184 = vadd.f32 0.0, %v183
  %v185 = vpop.f32.mrf.mxu0
  %v186 = vpop.f32.mrf.mxu0
  %187 = vdwg.mxu0
  %v194 = vunpack.c.l.b16 %v125
  %v195 = vunpack.c.h.b16 %v125
  %v196 = vunpack.c.l.b16 %v126
  %v197 = vunpack.c.h.b16 %v126
  %v198 = vunpack.c.l.b16 %v127
  %v199 = vunpack.c.h.b16 %v127
  %v200 = vunpack.c.l.b16 %v128
  %v201 = vunpack.c.h.b16 %v128
  %v202 = vunpack.c.l.b16 %v129
  %v203 = vunpack.c.h.b16 %v129
  %v204 = vunpack.c.l.b16 %v130
  %v205 = vunpack.c.h.b16 %v130
  %v206 = vpack.c.b16 %v196, %v194
  %v207 = vpack.c.b16 %v197, %v195
  %v208 = vpack.c.b16 %v200, %v198
  %v209 = vpack.c.b16 %v201, %v199
  %v210 = vpack.c.b16 %v204, %v202
  %v211 = vpack.c.b16 %v205, %v203
  %vm218 = vcmask 392192
  %v220 = vsel %vm218, %v124, 0
  %222 = vmatprep.subr.bf16.mxu0 0
  %223 = vmatpush1.bf16.msra.mxu0 0
  %224 = vmatprep.subr.bf16.mxu0 0
  %225 = vmatpush1.bf16.msra.mxu0 0
  %226 = vmatprep.subr.bf16.mxu0 0
  %227 = vmatpush1.bf16.msra.mxu0 0
  %228 = vmatprep.subr.bf16.mxu0 0
  %229 = vmatpush1.bf16.msra.mxu0 0
  %230 = vmatprep.subr.bf16.mxu0 0
  %231 = vmatpush1.bf16.msra.mxu0 0
  %232 = vmatprep.subr.bf16.mxu0 %v211
  %233 = vmatpush1.bf16.msra.mxu0 %v210
  %234 = vmatprep.subr.bf16.mxu0 %v209
  %235 = vmatpush1.bf16.msra.mxu0 %v208
  %236 = vmatprep.subr.bf16.mxu0 %v207
  %237 = vmatpush1.bf16.msra.mxu0 %v206
  %238 = vmatprep.subr.bf16.mxu0 0
  %239 = vmatpush2.bf16.msra.mxu0 0
  %240 = vmatprep.subr.bf16.mxu0 0
  %241 = vmatpush2.bf16.msra.mxu0 0
  %242 = vmatprep.subr.bf16.mxu0 0
  %243 = vmatpush2.bf16.msra.mxu0 0
  %244 = vmatprep.subr.bf16.mxu0 0
  %245 = vmatpush2.bf16.msra.mxu0 0
  %246 = vmatprep.subr.bf16.mxu0 0
  %247 = vmatpush2.bf16.msra.mxu0 0
  %248 = vmatprep.subr.bf16.mxu0 0
  %249 = vmatpush2.bf16.msra.mxu0 0
  %250 = vmatprep.subr.bf16.mxu0 0
  %251 = vmatpush2.bf16.msra.mxu0 0
  %252 = vmatprep.subr.bf16.mxu0 0
  %253 = vmatpush2.bf16.msra.mxu0 0
  %254 = vmatprep.mubr.bf16.mxu0 0
  %255 = vmatmul.mubr.bf16.gmra.mxu0 %v220
  %v256 = vpop.f32.mrf.mxu0
  %v257 = vadd.f32 %v182, %v256
  %v258 = vpop.f32.mrf.mxu0
  %v259 = vadd.f32 %v184, %v258
  %v260 = vpop.f32.mrf.mxu0
  %v261 = vpop.f32.mrf.mxu0
  %262 = vdwg.mxu0
  %v263 = vld [vmem:[%s6] sm:$0x3]
  %v265 = vlaneseq
  %v266 = vshrl.u32 %v265, 7
  %v267 = vsub.s32 0, %v266
  %v268 = vrot.slane %v263, %v267
  %v269 = vlaneseq
  %v270 = vshrl.u32 %v269, 7
  %v271 = vsub.s32 1, %v270
  %v272 = vrot.slane %v263, %v271
  %v275 = vadd.f32 %v257, %v268
  %v276 = vadd.f32 %v259, %v272
  %v277 = vmax.f32 %v275, 0.0
  %v278 = vmax.f32 %v276, 0.0
  %v279 = vpack.c.bf16 %v277, %v277
  %v280 = vpack.c.bf16 %v278, %v278
  %v281 = vld [vmem:[%s7] sm:$0xf]
  %v282 = vld [vmem:[%s7 + $0x4] sm:$0xf]
  %v283 = vld [vmem:[%s7 + $0x8] sm:$0xf]
  %v284 = vld [vmem:[%s7 + $0xc] sm:$0xf]
  %v285 = vld [vmem:[%s7 + $0x10] sm:$0xf]
  %v286 = vld [vmem:[%s7 + $0x14] sm:$0xf]
  %v287 = vld [vmem:[%s7 + $0x18] sm:$0xf]
  %v288 = vld [vmem:[%s7 + $0x1c] sm:$0xf]
  %v289 = vld [vmem:[%s7 + $0x20] sm:$0xf]
  %v290 = vld [vmem:[%s7 + $0x24] sm:$0xf]
  %v291 = vld [vmem:[%s7 + $0x28] sm:$0xf]
  %v292 = vld [vmem:[%s7 + $0x2c] sm:$0xf]
  %v293 = vld [vmem:[%s7 + $0x30] sm:$0xf]
  %v294 = vld [vmem:[%s7 + $0x34] sm:$0xf]
  %v295 = vld [vmem:[%s7 + $0x38] sm:$0xf]
  %v296 = vld [vmem:[%s7 + $0x3c] sm:$0xf]
  %v297 = vld [vmem:[%s7 + $0x40] sm:$0xf]
  %v298 = vld [vmem:[%s7 + $0x44] sm:$0xf]
  %v299 = vld [vmem:[%s7 + $0x48] sm:$0xf]
  %v300 = vld [vmem:[%s7 + $0x4c] sm:$0xf]
  %v301 = vld [vmem:[%s7 + $0x50] sm:$0xf]
  %v302 = vld [vmem:[%s7 + $0x54] sm:$0xf]
  %v303 = vld [vmem:[%s7 + $0x58] sm:$0xf]
  %v304 = vld [vmem:[%s7 + $0x5c] sm:$0xf]
  %v305 = vld [vmem:[%s7 + $0x60] sm:$0xf]
  %v306 = vld [vmem:[%s7 + $0x64] sm:$0xf]
  %v307 = vld [vmem:[%s7 + $0x68] sm:$0xf]
  %v308 = vld [vmem:[%s7 + $0x6c] sm:$0xf]
  %v309 = vld [vmem:[%s7 + $0x70] sm:$0xf]
  %v310 = vld [vmem:[%s7 + $0x74] sm:$0xf]
  %v311 = vld [vmem:[%s7 + $0x78] sm:$0xf]
  %v312 = vld [vmem:[%s7 + $0x7c] sm:$0xf]
  %v313 = vld [vmem:[%s8] sm:$0x1]
  %v315 = vlaneseq
  %v316 = vshrl.u32 %v315, 7
  %v317 = vsub.s32 0, %v316
  %v318 = vrot.slane %v313, %v317
  %v352 = vunpack.c.l.b16 %v281
  %v353 = vunpack.c.l.b16 %v282
  %v354 = vunpack.c.l.b16 %v283
  %v355 = vunpack.c.l.b16 %v284
  %v356 = vunpack.c.l.b16 %v285
  %v357 = vunpack.c.l.b16 %v286
  %v358 = vunpack.c.l.b16 %v287
  %v359 = vunpack.c.l.b16 %v288
  %v360 = vunpack.c.l.b16 %v289
  %v361 = vunpack.c.l.b16 %v290
  %v362 = vunpack.c.l.b16 %v291
  %v363 = vunpack.c.l.b16 %v292
  %v364 = vunpack.c.l.b16 %v293
  %v365 = vunpack.c.l.b16 %v294
  %v366 = vunpack.c.l.b16 %v295
  %v367 = vunpack.c.l.b16 %v296
  %v368 = vunpack.c.l.b16 %v297
  %v369 = vunpack.c.l.b16 %v298
  %v370 = vunpack.c.l.b16 %v299
  %v371 = vunpack.c.l.b16 %v300
  %v372 = vunpack.c.l.b16 %v301
  %v373 = vunpack.c.l.b16 %v302
  %v374 = vunpack.c.l.b16 %v303
  %v375 = vunpack.c.l.b16 %v304
  %v376 = vunpack.c.l.b16 %v305
  %v377 = vunpack.c.l.b16 %v306
  %v378 = vunpack.c.l.b16 %v307
  %v379 = vunpack.c.l.b16 %v308
  %v380 = vunpack.c.l.b16 %v309
  %v381 = vunpack.c.l.b16 %v310
  %v382 = vunpack.c.l.b16 %v311
  %v383 = vunpack.c.l.b16 %v312
  %v384 = vpack.c.b16 %v353, %v352
  %v385 = vpack.c.b16 %v355, %v354
  %v386 = vpack.c.b16 %v357, %v356
  %v387 = vpack.c.b16 %v359, %v358
  %v388 = vpack.c.b16 %v361, %v360
  %v389 = vpack.c.b16 %v363, %v362
  %v390 = vpack.c.b16 %v365, %v364
  %v391 = vpack.c.b16 %v367, %v366
  %v392 = vpack.c.b16 %v369, %v368
  %v393 = vpack.c.b16 %v371, %v370
  %v394 = vpack.c.b16 %v373, %v372
  %v395 = vpack.c.b16 %v375, %v374
  %v396 = vpack.c.b16 %v377, %v376
  %v397 = vpack.c.b16 %v379, %v378
  %v398 = vpack.c.b16 %v381, %v380
  %v399 = vpack.c.b16 %v383, %v382
  %416 = vmatprep.subr.bf16.mxu0 0
  %417 = vmatpush1.bf16.msra.mxu0 %v391
  %418 = vmatprep.subr.bf16.mxu0 0
  %419 = vmatpush1.bf16.msra.mxu0 %v390
  %420 = vmatprep.subr.bf16.mxu0 0
  %421 = vmatpush1.bf16.msra.mxu0 %v389
  %422 = vmatprep.subr.bf16.mxu0 0
  %423 = vmatpush1.bf16.msra.mxu0 %v388
  %424 = vmatprep.subr.bf16.mxu0 0
  %425 = vmatpush1.bf16.msra.mxu0 %v387
  %426 = vmatprep.subr.bf16.mxu0 0
  %427 = vmatpush1.bf16.msra.mxu0 %v386
  %428 = vmatprep.subr.bf16.mxu0 0
  %429 = vmatpush1.bf16.msra.mxu0 %v385
  %430 = vmatprep.subr.bf16.mxu0 0
  %431 = vmatpush1.bf16.msra.mxu0 %v384
  %432 = vmatprep.subr.bf16.mxu0 0
  %433 = vmatpush2.bf16.msra.mxu0 %v399
  %434 = vmatprep.subr.bf16.mxu0 0
  %435 = vmatpush2.bf16.msra.mxu0 %v398
  %436 = vmatprep.subr.bf16.mxu0 0
  %437 = vmatpush2.bf16.msra.mxu0 %v397
  %438 = vmatprep.subr.bf16.mxu0 0
  %439 = vmatpush2.bf16.msra.mxu0 %v396
  %440 = vmatprep.subr.bf16.mxu0 0
  %441 = vmatpush2.bf16.msra.mxu0 %v395
  %442 = vmatprep.subr.bf16.mxu0 0
  %443 = vmatpush2.bf16.msra.mxu0 %v394
  %444 = vmatprep.subr.bf16.mxu0 0
  %445 = vmatpush2.bf16.msra.mxu0 %v393
  %446 = vmatprep.subr.bf16.mxu0 0
  %447 = vmatpush2.bf16.msra.mxu0 %v392
  %448 = vmatprep.mubr.bf16.mxu0 %v280
  %449 = vmatmul.mubr.bf16.gmra.mxu0 %v279
  %v450 = vpop.f32.mrf.mxu0
  %v451 = vadd.f32 %v318, %v450
  %v452 = vpop.f32.mrf.mxu0
  %v453 = vpop.f32.mrf.mxu0
  %v454 = vpop.f32.mrf.mxu0
  %455 = vdwg.mxu0
  %v456 = vmax.f32 %v451, 0.0
  %v457 = vld [vmem:[%s9] sm:$0x1]
  %v459 = vlaneseq
  %v460 = vshrl.u32 %v459, 7
  %v461 = vsub.s32 0, %v460
  %v462 = vrot.slane %v457, %v461
  %v464 = vmul.f32 %v456, %v462
  %vm465 = vcmask 523264
  %v466 = vsel %vm465, %v464, 0.0
  %467 = vadd.xlane.f32.xlu0 %v466
  %v468 = vpop.xlane.xlu0 %467
  %v469 = vld [vmem:[#allocation2] sm:$0x1]
  %v471 = vlaneseq
  %v472 = vshrl.u32 %v471, 7
  %v473 = vsub.s32 0, %v472
  %v474 = vrot.slane %v469, %v473
  %v476 = vadd.f32 %v468, %v474
  %vm477 = vcmask 7168
  %478 = vst.msk [vmem:[%s11] sm:$0xff] %vm477, %v476
  // Predicated region
  $region46: #{tpu_custom_call.1} parent=0 // pred_check
    _
  $region47: #{tpu_custom_call.1} parent=0 // pred_check_branch
    %480 = sbr.rel (0) target = $region49
  $region48: #{tpu_custom_call.1} parent=0 // pred_region
    _
  $region49: #{tpu_custom_call.1} parent=0 // pred_fallthru
    _
  // Predicated region
  $region50: #{tpu_custom_call.1} parent=0 // pred_check
    _
  $region51: #{tpu_custom_call.1} parent=0 // pred_check_branch
    %482 = sbr.rel (0) target = $region53
  $region52: #{tpu_custom_call.1} parent=0 // pred_region
    _
  $region53: #{tpu_custom_call.1} parent=0 // pred_fallthru
    _

</llo_original>
